<compile_context>
chip_gen: v7x
topology: tpu7x:2x2x1
jax: 0.10.0
libtpu: 0.0.40
codegen_flags: <defaults>
</compile_context>

<pallas_src>
import functools

import jax
import jax.numpy as jnp
from jax.experimental import pallas as pl
from jax.experimental.pallas import tpu as pltpu


def _distill_kl_kernel(y_s_ref, y_t_ref, out_ref, *,
                       inv_t, n_rows, tile_n, mask_rows):
    """One batch tile -> one lane-dense partial-sum block (no carried state)."""
    i = pl.program_id(0)

    # Multiply by 1/T (Python-computed) instead of dividing by T.
    s = y_s_ref[...].astype(jnp.float32) * inv_t
    t = y_t_ref[...].astype(jnp.float32) * inv_t

    if mask_rows:
        # Rows past N in a padded last tile read undefined VMEM.  Zero BOTH
        # logit rows so their KL contribution is exactly 0 (identical
        # distributions) and no Inf/NaN is ever produced.  (VPU-slack work;
        # the kernel is HBM-bound.)
        row_ids = i * tile_n + jax.lax.broadcasted_iota(
            jnp.int32, (tile_n, 1), 0)
        valid = row_ids < n_rows
        s = jnp.where(valid, s, 0.0)
        t = jnp.where(valid, t, 0.0)

    s_shift = s - jnp.max(s, axis=-1, keepdims=True)
    t_shift = t - jnp.max(t, axis=-1, keepdims=True)

    exp_s = jnp.exp(s_shift)
    exp_t = jnp.exp(t_shift)
    z_s = jnp.sum(exp_s, axis=-1, keepdims=True)
    z_t = jnp.sum(exp_t, axis=-1, keepdims=True)

    # sum_c p_t * (log p_t - log p_s)
    #   = (sum_c exp_t * (t_shift - s_shift)) / z_t - (log z_t - log z_s)
    # The per-row log ratio never touches the C-wide tensor; the divide is
    # exact and only tile_n-wide.
    row_sum = jnp.sum(exp_t * (t_shift - s_shift), axis=-1, keepdims=True)
    row_kl = row_sum / z_t - (jnp.log(z_t) - jnp.log(z_s))

    partial = jnp.sum(row_kl)  # scalar partial for this tile
    out_ref[...] = jnp.broadcast_to(partial, out_ref.shape).astype(jnp.float32)


def _vmem_capacity_bytes():
    try:
        return int(pltpu.get_tpu_info().vmem_capacity_bytes)
    except Exception:
        return 64 * 1024 * 1024  # conservative fallback (v7x per-TC VMEM)


def _sublane_multiple(dtype):
    # 8 for f32, 16 for bf16, 32 for int8/fp8 -> dense packing, no relayout.
    return max(8, 32 // jnp.dtype(dtype).itemsize)


def _choose_tile_n(n, c, itemsize, sublane, input_budget_bytes):
    """Rows per tile, sized by bytes: ~4 MiB per input block, with
    2 inputs x 2 pipeline buffers kept within the generation-aware budget."""
    target_block = 4 * 1024 * 1024
    max_block = max(1, input_budget_bytes // 4)  # 2 inputs x 2 buffers
    block_bytes = min(target_block, max_block)
    rows = block_bytes // max(1, c * itemsize)
    rows = max(sublane, (rows // sublane) * sublane)
    n_pad = pl.cdiv(n, sublane) * sublane
    return min(rows, n_pad)


def distill_kl(y_s, y_t, temperature, *, tile_n=None):
    """Pallas implementation of DistillKL(T).forward(y_s, y_t) -> scalar."""
    assert y_s.shape == y_t.shape and y_s.ndim == 2
    n, c = y_s.shape
    itemsize = jnp.dtype(y_s.dtype).itemsize
    sublane = _sublane_multiple(y_s.dtype)

    # Generation-aware VMEM ceiling: ~48 MiB usable on v7x (64 MiB physical),
    # ~96 MiB on v5e/v6e (128 MiB physical).
    cap = _vmem_capacity_bytes()
    gen_cap = min((3 * cap) // 4, 96 * 1024 * 1024)
    input_budget = min(gen_cap - (4 << 20), 32 * 1024 * 1024)

    if tile_n is None:
        tile_n = _choose_tile_n(n, c, itemsize, sublane, input_budget)
    tile_n = max(sublane, (int(tile_n) // sublane) * sublane)

    num_tiles = pl.cdiv(n, tile_n)
    mask_rows = (num_tiles * tile_n) != n

    # TODO(synk): add a class-axis (C) tiling path (online/two-pass
    # log-sum-exp) for vocab-scale C where full-row blocks would not fit VMEM.

    t_f = float(temperature)
    kernel = functools.partial(
        _distill_kl_kernel,
        inv_t=1.0 / t_f,
        n_rows=n,
        tile_n=tile_n,
        mask_rows=mask_rows,
    )

    in_bytes = 2 * 2 * tile_n * c * itemsize          # 2 inputs x 2 buffers
    out_bytes = 2 * 8 * 128 * 4                       # tiny lane-dense output
    vmem_limit = min(gen_cap, in_bytes + out_bytes + (4 << 20))

    cost = pl.CostEstimate(
        flops=10 * n * c,
        transcendentals=2 * n * c,
        bytes_accessed=2 * n * c * itemsize + num_tiles * 8 * 128 * 4,
    )

    partials = pl.pallas_call(
        kernel,
        out_shape=jax.ShapeDtypeStruct((num_tiles, 8, 128), jnp.float32),
        grid_spec=pltpu.PrefetchScalarGridSpec(
            num_scalar_prefetch=0,
            grid=(num_tiles,),
            in_specs=[
                pl.BlockSpec((tile_n, c), lambda i: (i, 0)),
                pl.BlockSpec((tile_n, c), lambda i: (i, 0)),
            ],
            out_specs=pl.BlockSpec((1, 8, 128), lambda i: (i, 0, 0)),
        ),
        compiler_params=pltpu.CompilerParams(
            # No cross-step state -> tiles are independent; "parallel" lets
            # v7x's two TensorCores split the grid (no effect on v5e/v6e).
            dimension_semantics=("parallel",),
            vmem_limit_bytes=vmem_limit,
        ),
        cost_estimate=cost,
    )(y_s, y_t)

    scale = (t_f * t_f) / float(n)
    return jnp.sum(partials[:, 0, 0]) * scale


def _distill_kl_ref(y_s, y_t, temperature):
    """Pure-JAX reference for sanity checking."""
    T = float(temperature)
    log_p_s = jax.nn.log_softmax(y_s / T, axis=1)
    p_t = jax.nn.softmax(y_t / T, axis=1)
    log_p_t = jax.nn.log_softmax(y_t / T, axis=1)
    return jnp.sum(p_t * (log_p_t - log_p_s)) / y_s.shape[0] * (T ** 2)


if __name__ == "__main__":
    key = jax.random.PRNGKey(0)
    k1, k2 = jax.random.split(key)

    N, C = 20, 128          # batch (not a multiple of the row tile), classes
    T = 4.0                 # distillation temperature

    y_s = jax.random.normal(k1, (N, C), dtype=jnp.float32)  # student logits
    y_t = jax.random.normal(k2, (N, C), dtype=jnp.float32)  # teacher logits

    ref = _distill_kl_ref(y_s, y_t, T)

    # Byte-sized auto tiling (single tile at this small shape) ...
    loss_auto = jax.block_until_ready(distill_kl(y_s, y_t, T))
    # ... and a forced small tile to exercise the multi-tile parallel grid
    # plus last-tile input masking.
    loss_tiled = jax.block_until_ready(distill_kl(y_s, y_t, T, tile_n=8))

    # Exact per-row divide -> tight tolerance.
    assert jnp.allclose(loss_auto, ref, rtol=1e-5, atol=1e-6), (loss_auto, ref)
    assert jnp.allclose(loss_tiled, ref, rtol=1e-5, atol=1e-6), (loss_tiled, ref)

    print("KERNEL_OK")
</pallas_src>

<mosaic_0001>
module attributes {stable_mosaic.version = 11 : i64} {
  func.func @_distill_kl_kernel(%arg0: i32, %arg1: memref<24x128xf32, #tpu.memory_space<vmem>>, %arg2: memref<24x128xf32, #tpu.memory_space<vmem>>, %arg3: memref<1x8x128xf32, #tpu.memory_space<vmem>>) attributes {dimension_semantics = [#tpu.dimension_semantics<parallel>], iteration_bounds = array<i64: 1>, scalar_prefetch = 0 : i64, scratch_operands = 0 : i64, tpu.core_type = #tpu.core_type<tc>, window_params = [{transform_indices = @transform_0, window_bounds = array<i64: 24, 128>}, {transform_indices = @transform_1, window_bounds = array<i64: 24, 128>}, {transform_indices = @transform_2, window_bounds = array<i64: 1, 8, 128>}]} {
    %c0 = arith.constant 0 : index
    %c0_0 = arith.constant 0 : index
    %0 = vector.load %arg1[%c0, %c0_0] : memref<24x128xf32, #tpu.memory_space<vmem>>, vector<24x128xf32>
    %cst = arith.constant 2.500000e-01 : f32
    %1 = vector.broadcast %cst : f32 to vector<24x128xf32>
    %2 = arith.mulf %0, %1 : vector<24x128xf32>
    %c0_1 = arith.constant 0 : index
    %c0_2 = arith.constant 0 : index
    %3 = vector.load %arg2[%c0_1, %c0_2] : memref<24x128xf32, #tpu.memory_space<vmem>>, vector<24x128xf32>
    %cst_3 = arith.constant 2.500000e-01 : f32
    %4 = vector.broadcast %cst_3 : f32 to vector<24x128xf32>
    %5 = arith.mulf %3, %4 : vector<24x128xf32>
    %c24_i32 = arith.constant 24 : i32
    %6 = arith.muli %arg0, %c24_i32 : i32
    %7 = tpu.iota {dimensions = array<i32: 0>} : vector<24x1xi32>
    %8 = vector.broadcast %6 : i32 to vector<24x1xi32>
    %9 = arith.addi %8, %7 : vector<24x1xi32>
    %c20_i32 = arith.constant 20 : i32
    %10 = vector.broadcast %c20_i32 : i32 to vector<24x1xi32>
    %11 = arith.cmpi slt, %9, %10 : vector<24x1xi32>
    %cst_4 = arith.constant 0.000000e+00 : f32
    %12 = vector.shape_cast %11 : vector<24x1xi1> to vector<24x1xi1>
    %13 = vector.broadcast %12 : vector<24x1xi1> to vector<24x128xi1>
    %14 = vector.broadcast %cst_4 : f32 to vector<24x128xf32>
    %15 = arith.select %13, %2, %14 : vector<24x128xi1>, vector<24x128xf32>
    %cst_5 = arith.constant 0.000000e+00 : f32
    %16 = vector.shape_cast %11 : vector<24x1xi1> to vector<24x1xi1>
    %17 = vector.broadcast %16 : vector<24x1xi1> to vector<24x128xi1>
    %18 = vector.broadcast %cst_5 : f32 to vector<24x128xf32>
    %19 = arith.select %17, %5, %18 : vector<24x128xi1>, vector<24x128xf32>
    %cst_6 = arith.constant dense<0xFF800000> : vector<24xf32>
    %20 = vector.multi_reduction <maximumf>, %15, %cst_6 [1] : vector<24x128xf32> to vector<24xf32>
    %21 = vector.shape_cast %20 : vector<24xf32> to vector<24x1xf32>
    %22 = vector.broadcast %21 : vector<24x1xf32> to vector<24x128xf32>
    %23 = arith.subf %15, %22 : vector<24x128xf32>
    %cst_7 = arith.constant dense<0xFF800000> : vector<24xf32>
    %24 = vector.multi_reduction <maximumf>, %19, %cst_7 [1] : vector<24x128xf32> to vector<24xf32>
    %25 = vector.shape_cast %24 : vector<24xf32> to vector<24x1xf32>
    %26 = vector.broadcast %25 : vector<24x1xf32> to vector<24x128xf32>
    %27 = arith.subf %19, %26 : vector<24x128xf32>
    %28 = math.exp %23 : vector<24x128xf32>
    %29 = math.exp %27 : vector<24x128xf32>
    %cst_8 = arith.constant dense<0.000000e+00> : vector<24xf32>
    %30 = vector.multi_reduction <add>, %28, %cst_8 [1] : vector<24x128xf32> to vector<24xf32>
    %31 = vector.shape_cast %30 : vector<24xf32> to vector<24x1xf32>
    %cst_9 = arith.constant dense<0.000000e+00> : vector<24xf32>
    %32 = vector.multi_reduction <add>, %29, %cst_9 [1] : vector<24x128xf32> to vector<24xf32>
    %33 = vector.shape_cast %32 : vector<24xf32> to vector<24x1xf32>
    %34 = arith.subf %27, %23 : vector<24x128xf32>
    %35 = arith.mulf %29, %34 : vector<24x128xf32>
    %cst_10 = arith.constant dense<0.000000e+00> : vector<24xf32>
    %36 = vector.multi_reduction <add>, %35, %cst_10 [1] : vector<24x128xf32> to vector<24xf32>
    %37 = vector.shape_cast %36 : vector<24xf32> to vector<24x1xf32>
    %38 = arith.divf %37, %33 : vector<24x1xf32>
    %39 = math.log %33 : vector<24x1xf32>
    %40 = math.log %31 : vector<24x1xf32>
    %41 = arith.subf %39, %40 : vector<24x1xf32>
    %42 = arith.subf %38, %41 : vector<24x1xf32>
    %43 = vector.shape_cast %42 : vector<24x1xf32> to vector<1x24x1xf32>
    %cst_11 = arith.constant dense<0.000000e+00> : vector<1xf32>
    %44 = vector.multi_reduction <add>, %43, %cst_11 [1, 2] : vector<1x24x1xf32> to vector<1xf32>
    %45 = vector.shape_cast %44 : vector<1xf32> to vector<1x1x1xf32>
    %46 = vector.extract %45[0, 0, 0] : f32 from vector<1x1x1xf32>
    %47 = vector.broadcast %46 : f32 to vector<1x8x128xf32>
    %c0_12 = arith.constant 0 : index
    %c0_13 = arith.constant 0 : index
    %c0_14 = arith.constant 0 : index
    %48 = vector.load %arg3[%c0_12, %c0_13, %c0_14] : memref<1x8x128xf32, #tpu.memory_space<vmem>>, vector<1x8x128xf32>
    tpu.vector_store %arg3[%c0_12, %c0_13, %c0_14], %47 {strides = array<i32>} : memref<1x8x128xf32, #tpu.memory_space<vmem>>, vector<1x8x128xf32>,
    return
  }
  func.func @transform_0(%arg0: i32) -> (i32, i32) {
    %c0_i32 = arith.constant 0 : i32
    %c0_i32_0 = arith.constant 0 : i32
    return %arg0, %c0_i32 : i32, i32
  }
  func.func @transform_1(%arg0: i32) -> (i32, i32) {
    %c0_i32 = arith.constant 0 : i32
    %c0_i32_0 = arith.constant 0 : i32
    return %arg0, %c0_i32 : i32, i32
  }
  func.func @transform_2(%arg0: i32) -> (i32, i32, i32) {
    %c0_i32 = arith.constant 0 : i32
    %c0_i32_0 = arith.constant 0 : i32
    %c0_i32_1 = arith.constant 0 : i32
    return %arg0, %c0_i32, %c0_i32_0 : i32, i32, i32
  }
}

</mosaic_0001>

<llo_original>
// kernel: tpu_custom_call.1
$region0: #{tpu_custom_call.1}
  #allocation0 [shape = 'u32[]', space=smem, size = 0x4, offset = 0x4, fixed_abs, tag = 'smem constant byte address 0x4 - core index']
  #allocation1 [shape = 'u32[144,128]{1,0:T(1,128)}', space=vmem, size = 0x12000, scoped, tag = 'internal scratch']
  %s0 = inlined_call_operand.hbm [shape: f32[20,128], index: 0, kind: input, shape index: {}]
  %s1 = inlined_call_operand.hbm [shape: f32[20,128], index: 1, kind: input, shape index: {}]
  %s2 = inlined_call_operand.hbm [shape: f32[1,8,128], index: 2, kind: output, shape index: {}]
  %s3 = sld [smem:[#allocation0]]
  $region26: #{tpu_custom_call.1} parent=0
    _
  %s5 = ssub.s32 1, %s3
  %s6 = scalar_select 0, %s5, %s3
  $region1: #{tpu_custom_call.1} parent=0
    #allocation2 [shape = 'u8[12288]{0}', space=vmem, size = 0x3000, scoped, tag = 'input window, operand 0, single buffered']
    #allocation3 [shape = 's32[1]{0}', space=sflag, size = 0x4, scoped, tag = 'scoped memory for tpu_custom_call.1']
    #allocation4 [shape = 's32[1]{0}', space=sflag, size = 0x4, scoped, tag = 'scoped memory for tpu_custom_call.1']
    #allocation5 [shape = 'u8[12288]{0}', space=vmem, size = 0x3000, scoped, tag = 'input window, operand 1, single buffered']
    #allocation6 [shape = 's32[1]{0}', space=sflag, size = 0x4, scoped, tag = 'scoped memory for tpu_custom_call.1']
    #allocation7 [shape = 'u8[4096]{0}', space=vmem, size = 0x1000, scoped, tag = 'output window, operand 0, single buffered']
    %7 = vsyncpa [#allocation3], 0
    %8 = vsyncpa [#allocation6], 0
    %9 = vsyncpa [#allocation4], 0
    // Predicated region
    $region2: #{tpu_custom_call.1} parent=1 // pred_check
      _
    $region3: #{tpu_custom_call.1} parent=1 // pred_check_branch
      %11 = sbr.rel (0) target = $region5
    $region4: #{tpu_custom_call.1} parent=1 // pred_region
      %s13 = ssub.s32 384, 384
      %14 = vsyncadd [#allocation3], %s13
      %s15 = sshll.u32 [#allocation2], 4
      %s16 = int_to_ptr.vmem [resolvable:$true] %s15
      %21 = dma.hbm_to_vmem [thread:$0]  %s0, 384, %s16, [#allocation3], 128, 128, 8
    $region5: #{tpu_custom_call.1} parent=1 // pred_fallthru
      _
    // Predicated region
    $region6: #{tpu_custom_call.1} parent=1 // pred_check
      _
    $region7: #{tpu_custom_call.1} parent=1 // pred_check_branch
      %23 = sbr.rel (0) target = $region9
    $region8: #{tpu_custom_call.1} parent=1 // pred_region
      %s25 = ssub.s32 384, 384
      %26 = vsyncadd [#allocation6], %s25
      %s27 = sshll.u32 [#allocation5], 4
      %s28 = int_to_ptr.vmem [resolvable:$true] %s27
      %33 = dma.hbm_to_vmem [thread:$0]  %s1, 384, %s28, [#allocation6], 128, 128, 8
    $region9: #{tpu_custom_call.1} parent=1 // pred_fallthru
      _
    // Predicated region
    $region10: #{tpu_custom_call.1} parent=1 // pred_check
      _
    $region11: #{tpu_custom_call.1} parent=1 // pred_check_branch
      %35 = sbr.rel (0) target = $region13
    $region12: #{tpu_custom_call.1} parent=1 // pred_region
      %36 = dma.done [#allocation3], 384
    $region13: #{tpu_custom_call.1} parent=1 // pred_fallthru
      _
    // Predicated region
    $region14: #{tpu_custom_call.1} parent=1 // pred_check
      _
    $region15: #{tpu_custom_call.1} parent=1 // pred_check_branch
      %38 = sbr.rel (0) target = $region17
    $region16: #{tpu_custom_call.1} parent=1 // pred_region
      %39 = dma.done [#allocation6], 384
    $region17: #{tpu_custom_call.1} parent=1 // pred_fallthru
      _
    %v40 = vld [vmem:[#allocation2] sm:$0xff]
    %v41 = vld [vmem:[#allocation2 + $0x8] sm:$0xff]
    %v42 = vld [vmem:[#allocation2 + $0x10] sm:$0xff]
    %v43 = vmul.f32 %v40, 0.25
    %v44 = vmul.f32 %v41, 0.25
    %v45 = vmul.f32 %v42, 0.25
    %v46 = vld [vmem:[#allocation5] sm:$0xff]
    %v47 = vld [vmem:[#allocation5 + $0x8] sm:$0xff]
    %v48 = vld [vmem:[#allocation5 + $0x10] sm:$0xff]
    %v49 = vmul.f32 %v46, 0.25
    %v50 = vmul.f32 %v47, 0.25
    %v51 = vmul.f32 %v48, 0.25
    %s52 = smul.u32 0, 24
    %v53 = vlaneseq
    %v54 = vshrl.u32 %v53, 7
    %v55 = vadd.s32 %v54, 8
    %v56 = vadd.s32 %v54, 16
    %v57 = vstv %s52
    %v58 = vadd.s32 %v57, %v54
    %v59 = vadd.s32 %v57, %v55
    %v60 = vadd.s32 %v57, %v56
    %vm61 = vcmp.lt.s32.totalorder %v58, 20
    %vm62 = vcmp.lt.s32.totalorder %v59, 20
    %vm63 = vcmp.lt.s32.totalorder %v60, 20
    %v64 = vsel %vm61, 1, 0
    %v65 = vsel %vm62, 1, 0
    %v66 = vsel %vm63, 1, 0
    %vm67 = vcmp.eq.s32.totalorder %v64, 1
    %vm68 = vcmp.eq.s32.totalorder %v65, 1
    %vm69 = vcmp.eq.s32.totalorder %v66, 1
    %v70 = vsel %vm67, %v43, 0.0
    %v71 = vsel %vm68, %v44, 0.0
    %v72 = vsel %vm69, %v45, 0.0
    %v73 = vsel %vm67, %v49, 0.0
    %v74 = vsel %vm68, %v50, 0.0
    %v75 = vsel %vm69, %v51, 0.0
    %76 = vmax.xlane.f32.xlu0 %v70
    %v77 = vpop.xlane.xlu0 %76
    %78 = vmax.xlane.f32.xlu0 %v71
    %v79 = vpop.xlane.xlu0 %78
    %80 = vmax.xlane.f32.xlu0 %v72
    %v81 = vpop.xlane.xlu0 %80
    %v82 = vsub.f32 %v70, %v77
    %v83 = vsub.f32 %v71, %v79
    %v84 = vsub.f32 %v72, %v81
    %85 = vmax.xlane.f32.xlu0 %v73
    %v86 = vpop.xlane.xlu0 %85
    %87 = vmax.xlane.f32.xlu0 %v74
    %v88 = vpop.xlane.xlu0 %87
    %89 = vmax.xlane.f32.xlu0 %v75
    %v90 = vpop.xlane.xlu0 %89
    %v91 = vsub.f32 %v73, %v86
    %v92 = vsub.f32 %v74, %v88
    %v93 = vsub.f32 %v75, %v90
    %v94 = vmul.f32 %v82, 1.442695
    %v95 = vpow.pop %v94
    %v96 = vmul.f32 %v83, 1.442695
    %v97 = vpow.pop %v96
    %v98 = vmul.f32 %v84, 1.442695
    %v99 = vpow.pop %v98
    %v100 = vmul.f32 %v91, 1.442695
    %v101 = vpow.pop %v100
    %v102 = vmul.f32 %v92, 1.442695
    %v103 = vpow.pop %v102
    %v104 = vmul.f32 %v93, 1.442695
    %v105 = vpow.pop %v104
    %106 = vadd.xlane.f32.xlu0 %v95
    %v107 = vpop.xlane.xlu0 %106
    %108 = vadd.xlane.f32.xlu0 %v97
    %v109 = vpop.xlane.xlu0 %108
    %110 = vadd.xlane.f32.xlu0 %v99
    %v111 = vpop.xlane.xlu0 %110
    %112 = vadd.xlane.f32.xlu0 %v101
    %v113 = vpop.xlane.xlu0 %112
    %114 = vadd.xlane.f32.xlu0 %v103
    %v115 = vpop.xlane.xlu0 %114
    %116 = vadd.xlane.f32.xlu0 %v105
    %v117 = vpop.xlane.xlu0 %116
    %v118 = vsub.f32 %v91, %v82
    %v119 = vsub.f32 %v92, %v83
    %v120 = vsub.f32 %v93, %v84
    %v121 = vmul.f32 %v101, %v118
    %v122 = vmul.f32 %v103, %v119
    %v123 = vmul.f32 %v105, %v120
    %124 = vadd.xlane.f32.xlu0 %v121
    %v125 = vpop.xlane.xlu0 %124
    %126 = vadd.xlane.f32.xlu0 %v122
    %v127 = vpop.xlane.xlu0 %126
    %128 = vadd.xlane.f32.xlu0 %v123
    %v129 = vpop.xlane.xlu0 %128
    %v130 = vrcp.pop %v113
    %v131 = vmul.f32 %v125, %v130
    %v132 = vrcp.pop %v115
    %v133 = vmul.f32 %v127, %v132
    %v134 = vrcp.pop %v117
    %v135 = vmul.f32 %v129, %v134
    %v136 = vlog2.pop %v113
    %v137 = vmul.f32 %v136, 0.6931472
    %v138 = vlog2.pop %v115
    %v139 = vmul.f32 %v138, 0.6931472
    %v140 = vlog2.pop %v117
    %v141 = vmul.f32 %v140, 0.6931472
    %v142 = vlog2.pop %v107
    %v143 = vmul.f32 %v142, 0.6931472
    %v144 = vlog2.pop %v109
    %v145 = vmul.f32 %v144, 0.6931472
    %v146 = vlog2.pop %v111
    %v147 = vmul.f32 %v146, 0.6931472
    %v148 = vsub.f32 %v137, %v143
    %v149 = vsub.f32 %v139, %v145
    %v150 = vsub.f32 %v141, %v147
    %v151 = vsub.f32 %v131, %v148
    %v152 = vsub.f32 %v133, %v149
    %v153 = vsub.f32 %v135, %v150
    %vm154 = vcmask 7168
    %v155 = vsel %vm154, %v151, 0.0
    %v156 = vsel %vm154, %v152, 0.0
    %v157 = vadd.f32 %v155, %v156
    %v158 = vsel %vm154, %v153, 0.0
    %v159 = vadd.f32 %v157, %v158
    %160 = vadd.xlane.f32.xlu0 %v159
    %v161 = vpop.xlane.xlu0 %160
    %v162 = vrot.slane %v161, 4
    %v163 = vadd.f32 %v161, %v162
    %v164 = vrot.slane %v163, 2
    %v165 = vadd.f32 %v163, %v164
    %v166 = vrot.slane %v165, 1
    %v167 = vadd.f32 %v165, %v166
    %s168 = vtos %v167
    %v169 = vstv %s168
    %170 = vst [vmem:[#allocation7] sm:$0xff] %v169
    // Predicated region
    $region18: #{tpu_custom_call.1} parent=1 // pred_check
      _
    $region19: #{tpu_custom_call.1} parent=1 // pred_check_branch
      %172 = sbr.rel (0) target = $region21
    $region20: #{tpu_custom_call.1} parent=1 // pred_region
      %s174 = ssub.s32 128, 128
      %175 = vsyncadd [#allocation4], %s174
      %s177 = sshll.u32 [#allocation7], 4
      %s178 = int_to_ptr.vmem [resolvable:$true] %s177
      %180 = dma.vmem_to_hbm [thread:$0]  %s178, 128, %s2, [#allocation4]
    $region21: #{tpu_custom_call.1} parent=1 // pred_fallthru
      _
    // Predicated region
    $region22: #{tpu_custom_call.1} parent=1 // pred_check
      _
    $region23: #{tpu_custom_call.1} parent=1 // pred_check_branch
      %182 = sbr.rel (0) target = $region25
    $region24: #{tpu_custom_call.1} parent=1 // pred_region
      %183 = dma.done [#allocation4], 128
    $region25: #{tpu_custom_call.1} parent=1 // pred_fallthru
      _
    %184 = vsyncpa [#allocation3], 1
    %185 = vsyncpa [#allocation6], 1
    %186 = vsyncpa [#allocation4], 1

</llo_original>
